<compile_context>
chip_gen: v5e
topology: v5e:2x2
jax: 0.10.0
libtpu: 0.0.40
codegen_flags: <defaults>
</compile_context>

<pallas_src>
import functools

import jax
import jax.numpy as jnp
from jax import lax
from jax.experimental import pallas as pl
from jax.experimental.pallas import tpu as pltpu


def _round_up(x: int, m: int) -> int:
    return ((x + m - 1) // m) * m


def _pad_rows(x, rows: int):
    if x.shape[0] == rows:
        return x
    return jnp.pad(x, ((0, rows - x.shape[0]), (0, 0)))


def _l2_normalize(x):
    # Matches F.normalize(eps=1e-12 on the norm): clamp sum-of-squares at 1e-24.
    x = x.astype(jnp.float32)
    return x * lax.rsqrt(jnp.maximum(jnp.sum(x * x, axis=-1, keepdims=True), 1e-24))


def _vmem_limit_bytes() -> int:
    """Per-generation VMEM budget: ~40 MiB on v7x (64 MiB part), ~100 MiB on v5e/v6e."""
    cap = None
    try:
        cap = getattr(pltpu.get_tpu_info(), "vmem_capacity_bytes", None)
    except Exception:
        cap = None
    if not cap:
        cap = 64 * 1024 * 1024  # conservative default (smallest = v7x)
    return int(min(100 * 1024 * 1024, max(32 * 1024 * 1024, cap - 24 * 1024 * 1024)))


def _infonce_lse_kernel(*refs, n_pos_tiles, n_neg_tiles, pos_rem, neg_rem):
    """Flash-style per-row logsumexp over pre-normalized bf16 candidate banks."""
    if n_neg_tiles > 0:
        q_ref, posc_ref, negc_ref, out_ref, m_sc, l_sc = refs
    else:
        q_ref, posc_ref, out_ref, m_sc, l_sc = refs
        negc_ref = None

    j = pl.program_id(1)

    @pl.when(j == 0)
    def _init():
        m_sc[...] = jnp.full(m_sc.shape, -jnp.inf, dtype=jnp.float32)
        l_sc[...] = jnp.zeros(l_sc.shape, dtype=jnp.float32)

    def _step(c_ref, valid_rows=None):
        # (tq, D) x (tc, D), contracting D of both operands -> (tq, tc) on MXU.
        s = lax.dot_general(q_ref[...], c_ref[...],
                            dimension_numbers=(((1,), (1,)), ((), ())),
                            preferred_element_type=jnp.float32)
        if valid_rows is not None:
            # Only emitted on the single tile of a bank that has padded rows.
            col = lax.broadcasted_iota(jnp.int32, s.shape, 1)
            s = jnp.where(col < valid_rows, s, -1e30)
        m_prev = m_sc[...]
        m_new = jnp.maximum(m_prev, jnp.max(s, axis=-1, keepdims=True))
        l_sc[...] = (l_sc[...] * jnp.exp(m_prev - m_new)
                     + jnp.sum(jnp.exp(s - m_new), axis=-1, keepdims=True))
        m_sc[...] = m_new

    def _bank(c_ref, n_tiles, rem):
        if rem:
            @pl.when(j < n_tiles - 1)
            def _full():
                _step(c_ref)

            @pl.when(j == n_tiles - 1)
            def _tail():
                _step(c_ref, valid_rows=rem)
        else:
            @pl.when(j < n_tiles)
            def _full():
                _step(c_ref)

    _bank(posc_ref, n_pos_tiles, pos_rem)
    if negc_ref is not None:
        _bank(negc_ref, n_neg_tiles, neg_rem)

    @pl.when(j == pl.num_programs(1) - 1)
    def _finalize():
        lse = m_sc[...] + jnp.log(l_sc[...])                   # (tq, 1)
        # Lane-dense unmasked store; wrapper reads column 0.
        out_ref[...] = jnp.broadcast_to(lse, out_ref.shape)    # (tq, 128)


def infonce_loss(query_embeddings, positive_embeddings, negative_embeddings=None,
                 *, temperature: float = 0.05, mxu_dtype=jnp.bfloat16,
                 block_q=None, block_c=None):
    """InfoNCE with in-batch negatives (unpaired mode), mean-reduced CE."""
    q = jnp.asarray(query_embeddings)
    pos = jnp.asarray(positive_embeddings)
    B, D = q.shape
    assert pos.shape == (B, D)
    neg = None if negative_embeddings is None else jnp.asarray(negative_embeddings)
    N = 0 if neg is None else neg.shape[0]

    inv_temp = float(1.0 / temperature)

    # ---- hoisted preprocessing (wrapper / XLA): O((B+C)*D), done ONCE --------
    qn_mxu = (_l2_normalize(q) * inv_temp).astype(mxu_dtype)
    pn_mxu = _l2_normalize(pos).astype(mxu_dtype)
    # Diagonal (target) logit from the same bf16-rounded operands the MXU sees.
    diag = jnp.sum(qn_mxu.astype(jnp.float32) * pn_mxu.astype(jnp.float32), axis=-1)
    negn_mxu = None if neg is None else _l2_normalize(neg).astype(mxu_dtype)

    # ---- tile sizes -----------------------------------------------------------
    if block_q is not None:
        tq = block_q
    else:
        tq = min(256, _round_up(B, 8))
        # Keep the "parallel" query axis at >=2 tiles so v7x's 2nd TC isn't idle.
        if B > 8 and pl.cdiv(B, tq) == 1:
            tq = max(8, _round_up(pl.cdiv(B, 2), 8))
    cand_max = max(B, N) if N else B
    tc = block_c if block_c is not None else min(512, _round_up(cand_max, 8))

    n_q_tiles = pl.cdiv(B, tq)
    n_pos_tiles = pl.cdiv(B, tc)
    n_neg_tiles = pl.cdiv(N, tc) if N else 0
    n_c_steps = max(n_pos_tiles, n_neg_tiles)

    B_pad = n_q_tiles * tq
    q_in = _pad_rows(qn_mxu, B_pad)                         # normalized, 1/T-scaled
    posc = _pad_rows(pn_mxu, n_pos_tiles * tc)              # candidate-tiled positives

    inputs = [q_in, posc]
    in_specs = [
        pl.BlockSpec((tq, D), lambda i, j: (i, 0)),
        pl.BlockSpec((tc, D), lambda i, j: (jnp.minimum(j, n_pos_tiles - 1), 0)),
    ]
    if N:
        negc = _pad_rows(negn_mxu, n_neg_tiles * tc)        # candidate-tiled negatives
        inputs.append(negc)
        in_specs.append(
            pl.BlockSpec((tc, D),
                         lambda i, j: (jnp.minimum(j, n_neg_tiles - 1), 0)))

    kernel = functools.partial(
        _infonce_lse_kernel,
        n_pos_tiles=n_pos_tiles, n_neg_tiles=n_neg_tiles,
        pos_rem=B % tc, neg_rem=(N % tc) if N else 0)

    C_total = B + N
    itemsize = jnp.dtype(mxu_dtype).itemsize
    cost = pl.CostEstimate(
        flops=2 * B * C_total * D,
        transcendentals=B * C_total,
        bytes_accessed=itemsize * (B_pad * D
                                   + n_q_tiles * (n_pos_tiles + n_neg_tiles) * tc * D)
                       + 4 * B_pad * 128,
    )

    lse_rows = pl.pallas_call(
        kernel,
        out_shape=jax.ShapeDtypeStruct((B_pad, 128), jnp.float32),
        grid_spec=pltpu.PrefetchScalarGridSpec(
            num_scalar_prefetch=0,
            grid=(n_q_tiles, n_c_steps),
            in_specs=in_specs,
            out_specs=pl.BlockSpec((tq, 128), lambda i, j: (i, 0)),
            scratch_shapes=[
                pltpu.VMEM((tq, 1), jnp.float32),   # running row max
                pltpu.VMEM((tq, 1), jnp.float32),   # running row sum of exp
            ]),
        compiler_params=pltpu.CompilerParams(
            dimension_semantics=("parallel", "arbitrary"),
            vmem_limit_bytes=_vmem_limit_bytes()),
        cost_estimate=cost,
    )(*inputs)

    # Per-row loss = logsumexp - diagonal logit; mean-reduce (tiny, wrapper-side).
    return jnp.mean(lse_rows[:B, 0] - diag)


def _infonce_ref_f32(q, p, n=None, temperature=0.05):
    """Pure-f32 JAX reference (exact module semantics)."""
    def norm(x):
        return x / jnp.maximum(jnp.linalg.norm(x, axis=-1, keepdims=True), 1e-12)
    qn = norm(q)
    c = p if n is None else jnp.concatenate([p, n], axis=0)
    cn = norm(c)
    logits = (qn @ cn.T) / temperature
    idx = jnp.arange(q.shape[0])
    lse = jax.scipy.special.logsumexp(logits, axis=-1)
    return jnp.mean(lse - logits[idx, idx])


def _infonce_matched_ref(q, p, n=None, temperature=0.05, mxu_dtype=jnp.bfloat16):
    """Pure-JAX reference matching the kernel's mixed-precision numerics."""
    inv_t = 1.0 / temperature
    qn = (_l2_normalize(q) * inv_t).astype(mxu_dtype)
    pn = _l2_normalize(p).astype(mxu_dtype)
    c = pn if n is None else jnp.concatenate([pn, _l2_normalize(n).astype(mxu_dtype)], 0)
    logits = lax.dot_general(qn, c, dimension_numbers=(((1,), (1,)), ((), ())),
                             preferred_element_type=jnp.float32)
    diag = jnp.sum(qn.astype(jnp.float32) * pn.astype(jnp.float32), axis=-1)
    lse = jax.scipy.special.logsumexp(logits, axis=-1)
    return jnp.mean(lse - diag)


if __name__ == "__main__":
    key = jax.random.PRNGKey(0)
    k_q, k_p, k_n = jax.random.split(key, 3)

    B, D, N_NEG = 8, 32, 16
    q = jax.random.normal(k_q, (B, D), dtype=jnp.float32)
    p = jax.random.normal(k_p, (B, D), dtype=jnp.float32)
    n = jax.random.normal(k_n, (N_NEG, D), dtype=jnp.float32)

    # Case 1: no explicit negatives (in-batch positives act as negatives).
    loss1 = infonce_loss(q, p)
    jax.block_until_ready(loss1)

    # Case 2: explicit negatives + in-batch negatives.
    loss2 = infonce_loss(q, p, n)
    jax.block_until_ready(loss2)

    # Case 3: forces a real multi-tile grid (query-row padding, clamped bank
    # tiles, last-tile-only column masking, multi-step online logsumexp).
    B3, N3 = 12, 20
    k_q3, k_p3, k_n3 = jax.random.split(jax.random.PRNGKey(1), 3)
    q3 = jax.random.normal(k_q3, (B3, D), dtype=jnp.float32)
    p3 = jax.random.normal(k_p3, (B3, D), dtype=jnp.float32)
    n3 = jax.random.normal(k_n3, (N3, D), dtype=jnp.float32)
    loss3 = infonce_loss(q3, p3, n3, block_q=8, block_c=8)
    jax.block_until_ready(loss3)

    for got, args in [(loss1, (q, p, None)),
                      (loss2, (q, p, n)),
                      (loss3, (q3, p3, n3))]:
        matched = _infonce_matched_ref(*args)
        full = _infonce_ref_f32(*args)
        # Tight check against the precision-matched reference; loose check
        # against the pure-f32 reference (deviation comes from bf16 MXU operands).
        assert jnp.allclose(got, matched, rtol=2e-4, atol=2e-4), (got, matched)
        assert jnp.allclose(got, full, rtol=5e-2, atol=2e-1), (got, full)

    print("KERNEL_OK")
</pallas_src>

<mosaic_0001>
module attributes {stable_mosaic.version = 11 : i64} {
  func.func @_infonce_lse_kernel(%arg0: i32, %arg1: i32, %arg2: memref<8x32xbf16, #tpu.memory_space<vmem>>, %arg3: memref<8x32xbf16, #tpu.memory_space<vmem>>, %arg4: memref<8x128xf32, #tpu.memory_space<vmem>>, %arg5: memref<8x1xf32, #tpu.memory_space<vmem>>, %arg6: memref<8x1xf32, #tpu.memory_space<vmem>>) attributes {dimension_semantics = [#tpu.dimension_semantics<parallel>, #tpu.dimension_semantics<arbitrary>], iteration_bounds = array<i64: 1, 1>, scalar_prefetch = 0 : i64, scratch_operands = 2 : i64, tpu.core_type = #tpu.core_type<tc>, window_params = [{transform_indices = @transform_0, window_bounds = array<i64: 8, 32>}, {transform_indices = @transform_1, window_bounds = array<i64: 8, 32>}, {transform_indices = @transform_2, window_bounds = array<i64: 8, 128>}]} {
    %c0_i32 = arith.constant 0 : i32
    %0 = arith.cmpi eq, %arg1, %c0_i32 : i32
    %1 = arith.extui %0 : i1 to i32
    %c0_i32_0 = arith.constant 0 : i32
    %2 = arith.cmpi ne, %1, %c0_i32_0 : i32
    scf.if %2 {
      %cst = arith.constant 0xFF800000 : f32
      %9 = vector.broadcast %cst : f32 to vector<8x1xf32>
      %c0 = arith.constant 0 : index
      %c0_4 = arith.constant 0 : index
      %10 = vector.load %arg5[%c0, %c0_4] : memref<8x1xf32, #tpu.memory_space<vmem>>, vector<8x1xf32>
      tpu.vector_store %arg5[%c0, %c0_4], %9 {strides = array<i32>} : memref<8x1xf32, #tpu.memory_space<vmem>>, vector<8x1xf32>,
      %cst_5 = arith.constant 0.000000e+00 : f32
      %11 = vector.broadcast %cst_5 : f32 to vector<8x1xf32>
      %c0_6 = arith.constant 0 : index
      %c0_7 = arith.constant 0 : index
      %12 = vector.load %arg6[%c0_6, %c0_7] : memref<8x1xf32, #tpu.memory_space<vmem>>, vector<8x1xf32>
      tpu.vector_store %arg6[%c0_6, %c0_7], %11 {strides = array<i32>} : memref<8x1xf32, #tpu.memory_space<vmem>>, vector<8x1xf32>,
    } else {
    }
    %c1_i32 = arith.constant 1 : i32
    %3 = arith.cmpi slt, %arg1, %c1_i32 : i32
    %4 = arith.extui %3 : i1 to i32
    %c0_i32_1 = arith.constant 0 : i32
    %5 = arith.cmpi ne, %4, %c0_i32_1 : i32
    scf.if %5 {
      %c0 = arith.constant 0 : index
      %c0_4 = arith.constant 0 : index
      %9 = vector.load %arg2[%c0, %c0_4] : memref<8x32xbf16, #tpu.memory_space<vmem>>, vector<8x32xbf16>
      %c0_5 = arith.constant 0 : index
      %c0_6 = arith.constant 0 : index
      %10 = vector.load %arg3[%c0_5, %c0_6] : memref<8x32xbf16, #tpu.memory_space<vmem>>, vector<8x32xbf16>
      %cst = arith.constant dense<0.000000e+00> : vector<8x8xf32>
      %11 = tpu.matmul %9, %10, %cst {dimension_numbers = #tpu.dot_dimension_numbers<[1], [1], [0], [0], [0, 0, 1, 0], [], []>} : vector<8x32xbf16>, vector<8x32xbf16>, vector<8x8xf32> -> vector<8x8xf32>
      %c0_7 = arith.constant 0 : index
      %c0_8 = arith.constant 0 : index
      %12 = vector.load %arg5[%c0_7, %c0_8] : memref<8x1xf32, #tpu.memory_space<vmem>>, vector<8x1xf32>
      %cst_9 = arith.constant dense<0xFF800000> : vector<8xf32>
      %13 = vector.multi_reduction <maximumf>, %11, %cst_9 [1] : vector<8x8xf32> to vector<8xf32>
      %14 = vector.shape_cast %13 : vector<8xf32> to vector<8x1xf32>
      %15 = arith.maximumf %12, %14 : vector<8x1xf32>
      %c0_10 = arith.constant 0 : index
      %c0_11 = arith.constant 0 : index
      %16 = vector.load %arg6[%c0_10, %c0_11] : memref<8x1xf32, #tpu.memory_space<vmem>>, vector<8x1xf32>
      %17 = arith.subf %12, %15 : vector<8x1xf32>
      %18 = math.exp %17 : vector<8x1xf32>
      %19 = arith.mulf %16, %18 : vector<8x1xf32>
      %20 = vector.broadcast %15 : vector<8x1xf32> to vector<8x8xf32>
      %21 = arith.subf %11, %20 : vector<8x8xf32>
      %22 = math.exp %21 : vector<8x8xf32>
      %cst_12 = arith.constant dense<0.000000e+00> : vector<8xf32>
      %23 = vector.multi_reduction <add>, %22, %cst_12 [1] : vector<8x8xf32> to vector<8xf32>
      %24 = vector.shape_cast %23 : vector<8xf32> to vector<8x1xf32>
      %25 = arith.addf %19, %24 : vector<8x1xf32>
      %c0_13 = arith.constant 0 : index
      %c0_14 = arith.constant 0 : index
      %26 = vector.load %arg6[%c0_13, %c0_14] : memref<8x1xf32, #tpu.memory_space<vmem>>, vector<8x1xf32>
      tpu.vector_store %arg6[%c0_13, %c0_14], %25 {strides = array<i32>} : memref<8x1xf32, #tpu.memory_space<vmem>>, vector<8x1xf32>,
      %c0_15 = arith.constant 0 : index
      %c0_16 = arith.constant 0 : index
      %27 = vector.load %arg5[%c0_15, %c0_16] : memref<8x1xf32, #tpu.memory_space<vmem>>, vector<8x1xf32>
      tpu.vector_store %arg5[%c0_15, %c0_16], %15 {strides = array<i32>} : memref<8x1xf32, #tpu.memory_space<vmem>>, vector<8x1xf32>,
    } else {
    }
    %c0_i32_2 = arith.constant 0 : i32
    %6 = arith.cmpi eq, %arg1, %c0_i32_2 : i32
    %7 = arith.extui %6 : i1 to i32
    %c0_i32_3 = arith.constant 0 : i32
    %8 = arith.cmpi ne, %7, %c0_i32_3 : i32
    scf.if %8 {
      %c0 = arith.constant 0 : index
      %c0_4 = arith.constant 0 : index
      %9 = vector.load %arg5[%c0, %c0_4] : memref<8x1xf32, #tpu.memory_space<vmem>>, vector<8x1xf32>
      %c0_5 = arith.constant 0 : index
      %c0_6 = arith.constant 0 : index
      %10 = vector.load %arg6[%c0_5, %c0_6] : memref<8x1xf32, #tpu.memory_space<vmem>>, vector<8x1xf32>
      %11 = math.log %10 : vector<8x1xf32>
      %12 = arith.addf %9, %11 : vector<8x1xf32>
      %13 = vector.shape_cast %12 : vector<8x1xf32> to vector<8x1xf32>
      %14 = vector.broadcast %13 : vector<8x1xf32> to vector<8x128xf32>
      %c0_7 = arith.constant 0 : index
      %c0_8 = arith.constant 0 : index
      %15 = vector.load %arg4[%c0_7, %c0_8] : memref<8x128xf32, #tpu.memory_space<vmem>>, vector<8x128xf32>
      tpu.vector_store %arg4[%c0_7, %c0_8], %14 {strides = array<i32>} : memref<8x128xf32, #tpu.memory_space<vmem>>, vector<8x128xf32>,
    } else {
    }
    return
  }
  func.func @transform_0(%arg0: i32, %arg1: i32) -> (i32, i32) {
    %c0_i32 = arith.constant 0 : i32
    %c0_i32_0 = arith.constant 0 : i32
    return %arg0, %c0_i32 : i32, i32
  }
  func.func @transform_1(%arg0: i32, %arg1: i32) -> (i32, i32) {
    %c0_i32 = arith.constant 0 : i32
    %0 = arith.minsi %arg1, %c0_i32 : i32
    %c0_i32_0 = arith.constant 0 : i32
    %c0_i32_1 = arith.constant 0 : i32
    return %0, %c0_i32_0 : i32, i32
  }
  func.func @transform_2(%arg0: i32, %arg1: i32) -> (i32, i32) {
    %c0_i32 = arith.constant 0 : i32
    %c0_i32_0 = arith.constant 0 : i32
    return %arg0, %c0_i32 : i32, i32
  }
}

</mosaic_0001>

<llo_original>
// kernel: tpu_custom_call.1
$region0: #{tpu_custom_call.1}
  #allocation0 [shape = 'u32[]', space=smem, size = 0x4, offset = 0x4, fixed_abs, tag = 'smem constant byte address 0x4 - core index']
  #allocation1 [shape = 'u32[72,128]{1,0:T(1,128)}', space=vmem, size = 0x9000, scoped, tag = 'internal scratch']
  #allocation2 [shape = 'f32[8,1]{1,0:T(8,128)}', space=vmem, size = 0x1000, scoped, tag = 'scratch operand']
  #allocation3 [shape = 'f32[8,1]{1,0:T(8,128)}', space=vmem, size = 0x1000, scoped, tag = 'scratch operand']
  %s0 = inlined_call_operand.hbm [shape: bf16[8,32], index: 0, kind: input, shape index: {}]
  %s1 = inlined_call_operand.hbm [shape: bf16[8,32], index: 1, kind: input, shape index: {}]
  %s2 = inlined_call_operand.hbm [shape: f32[8,128], index: 2, kind: output, shape index: {}]
  %s3 = sld [smem:[#allocation0]]
  $region38: #{tpu_custom_call.1} parent=0
    _
  %s5 = ssub.s32 1, %s3
  %s6 = scalar_select 0, %s5, %s3
  $region1: #{tpu_custom_call.1} parent=0
    #allocation4 [shape = 'u8[2048]{0}', space=vmem, size = 0x800, scoped, tag = 'input window, operand 0, single buffered']
    #allocation5 [shape = 's32[1]{0}', space=sflag, size = 0x4, scoped, tag = 'scoped memory for tpu_custom_call.1']
    #allocation6 [shape = 's32[1]{0}', space=sflag, size = 0x4, scoped, tag = 'scoped memory for tpu_custom_call.1']
    #allocation7 [shape = 'u8[2048]{0}', space=vmem, size = 0x800, scoped, tag = 'input window, operand 1, single buffered']
    #allocation8 [shape = 's32[1]{0}', space=sflag, size = 0x4, scoped, tag = 'scoped memory for tpu_custom_call.1']
    #allocation9 [shape = 'u8[4096]{0}', space=vmem, size = 0x1000, scoped, tag = 'output window, operand 0, single buffered']
    %7 = vsyncpa [#allocation5], 0
    %8 = vsyncpa [#allocation8], 0
    %9 = vsyncpa [#allocation6], 0
    // Predicated region
    $region2: #{tpu_custom_call.1} parent=1 // pred_check
      _
    $region3: #{tpu_custom_call.1} parent=1 // pred_check_branch
      %11 = sbr.rel (0) target = $region5
    $region4: #{tpu_custom_call.1} parent=1 // pred_region
      %13 = vsyncadd [#allocation5], 0
      %s15 = sshll.u32 %s0, 4
      %s16 = int_to_ptr.hbm [resolvable:$true] %s15
      %s17 = sshll.u32 [#allocation4], 4
      %s18 = int_to_ptr.vmem [resolvable:$true] %s17
      %20 = dma.hbm_to_vmem [thread:$0]  %s16, 64, %s18, [#allocation5]
    $region5: #{tpu_custom_call.1} parent=1 // pred_fallthru
      _
    // Predicated region
    $region6: #{tpu_custom_call.1} parent=1 // pred_check
      _
    $region7: #{tpu_custom_call.1} parent=1 // pred_check_branch
      %22 = sbr.rel (0) target = $region9
    $region8: #{tpu_custom_call.1} parent=1 // pred_region
      %24 = vsyncadd [#allocation8], 0
      %s26 = sshll.u32 %s1, 4
      %s27 = int_to_ptr.hbm [resolvable:$true] %s26
      %s28 = sshll.u32 [#allocation7], 4
      %s29 = int_to_ptr.vmem [resolvable:$true] %s28
      %31 = dma.hbm_to_vmem [thread:$0]  %s27, 64, %s29, [#allocation8]
    $region9: #{tpu_custom_call.1} parent=1 // pred_fallthru
      _
    // Predicated region
    $region10: #{tpu_custom_call.1} parent=1 // pred_check
      _
    $region11: #{tpu_custom_call.1} parent=1 // pred_check_branch
      %33 = sbr.rel (0) target = $region13
    $region12: #{tpu_custom_call.1} parent=1 // pred_region
      %35 = dma.done [#allocation5], 64
    $region13: #{tpu_custom_call.1} parent=1 // pred_fallthru
      _
    // Predicated region
    $region14: #{tpu_custom_call.1} parent=1 // pred_check
      _
    $region15: #{tpu_custom_call.1} parent=1 // pred_check_branch
      %37 = sbr.rel (0) target = $region17
    $region16: #{tpu_custom_call.1} parent=1 // pred_region
      %39 = dma.done [#allocation8], 64
    $region17: #{tpu_custom_call.1} parent=1 // pred_fallthru
      _
    %p41 = scmp.eq.s32.totalorder 0, 0
    // Predicated region
    $region18: #{tpu_custom_call.1} parent=1 // pred_check
      %p42 = pneg %p41
    $region19: #{tpu_custom_call.1} parent=1 // pred_check_branch
      %44 = sbr.rel (%p42) target = $region21
    $region20: #{tpu_custom_call.1} parent=1 // pred_region
      %vm45 = vcmask 7168
      %46 = vst.msk [vmem:[#allocation2] sm:$0xff] %vm45, -inf
      %47 = vst.msk [vmem:[#allocation3] sm:$0xff] %vm45, 0.0
    $region21: #{tpu_custom_call.1} parent=1 // pred_fallthru
      _
    %p48 = scmp.lt.s32.totalorder 0, 1
    // Predicated region
    $region22: #{tpu_custom_call.1} parent=1 // pred_check
      %p49 = pneg %p48
    $region23: #{tpu_custom_call.1} parent=1 // pred_check_branch
      %51 = sbr.rel (%p49) target = $region25
    $region24: #{tpu_custom_call.1} parent=1 // pred_region
      %v52 = vld [vmem:[#allocation4] sm:$0xf]
      %v53 = vld [vmem:[#allocation7] sm:$0xf]
      %vm54 = vcmask 261120
      %v56 = vsel %vm54, %v52, 0
      %v59 = vsel %vm54, %v53, 0
      %61 = vmatpush.bf16.xpose.msra.mxu0 0
      %62 = vmatpush.bf16.xpose.msra.mxu0 0
      %63 = vmatpush.bf16.xpose.msra.mxu0 0
      %64 = vmatpush.bf16.xpose.msra.mxu0 0
      %65 = vmatpush.bf16.xpose.msra.mxu0 0
      %66 = vmatpush.bf16.xpose.msra.mxu0 0
      %67 = vmatpush.bf16.xpose.msra.mxu0 0
      %68 = vmatpush.bf16.xpose.msra.mxu0 %v59
      %69 = vmatmul.bf16.gmra.mxu0 %v56
      %v70 = vpop.f32.mrf.mxu0
      %v71 = vadd.f32 0.0, %v70
      %v72 = vpop.f32.mrf.mxu0
      %73 = vdwg.mxu0
      %v74 = vld [vmem:[#allocation2] sm:$0xff]
      %vm75 = vcmask 64512
      %v76 = vsel %vm75, %v71, -inf
      %77 = vmax.xlane.f32.xlu0 %v76
      %v78 = vpop.xlane.xlu0 %77
      %v79 = vmax.f32 %v74, %v78
      %v80 = vld [vmem:[#allocation3] sm:$0xff]
      %v81 = vsub.f32 %v74, %v79
      %v82 = vmul.f32 %v81, 1.442695
      %v83 = vpow.pop %v82
      %v84 = vmul.f32 %v80, %v83
      %86 = vset.pattern.permute.xlu0 0
      %87 = vperm.xlu0 %86, %v79
      %v88 = vpop.permute.xlu0 %87
      %v90 = vsub.f32 %v71, %v88
      %v91 = vmul.f32 %v90, 1.442695
      %v92 = vpow.pop %v91
      %v93 = vsel %vm75, %v92, 0.0
      %94 = vadd.xlane.f32.xlu0 %v93
      %v95 = vpop.xlane.xlu0 %94
      %v96 = vadd.f32 %v84, %v95
      %vm97 = vcmask 7168
      %98 = vst.msk [vmem:[#allocation3] sm:$0xff] %vm97, %v96
      %99 = vst.msk [vmem:[#allocation2] sm:$0xff] %vm97, %v79
    $region25: #{tpu_custom_call.1} parent=1 // pred_fallthru
      _
    // Predicated region
    $region26: #{tpu_custom_call.1} parent=1 // pred_check
      %p100 = pneg %p41
    $region27: #{tpu_custom_call.1} parent=1 // pred_check_branch
      %102 = sbr.rel (%p100) target = $region29
    $region28: #{tpu_custom_call.1} parent=1 // pred_region
      %v103 = vld [vmem:[#allocation2] sm:$0xff]
      %v104 = vld [vmem:[#allocation3] sm:$0xff]
      %v105 = vlog2.pop %v104
      %v106 = vmul.f32 %v105, 0.6931472
      %v107 = vadd.f32 %v103, %v106
      %109 = vset.pattern.permute.xlu0 0
      %110 = vperm.xlu0 %109, %v107
      %v111 = vpop.permute.xlu0 %110
      %113 = vst [vmem:[#allocation9] sm:$0xff] %v111
    $region29: #{tpu_custom_call.1} parent=1 // pred_fallthru
      _
    // Predicated region
    $region30: #{tpu_custom_call.1} parent=1 // pred_check
      _
    $region31: #{tpu_custom_call.1} parent=1 // pred_check_branch
      %115 = sbr.rel (0) target = $region33
    $region32: #{tpu_custom_call.1} parent=1 // pred_region
      %117 = vsyncadd [#allocation6], 0
      %s119 = sshll.u32 [#allocation9], 4
      %s120 = int_to_ptr.vmem [resolvable:$true] %s119
      %s121 = sshll.u32 %s2, 4
      %s122 = int_to_ptr.hbm [resolvable:$true] %s121
      %124 = dma.vmem_to_hbm [thread:$0]  %s120, 128, %s122, [#allocation6]
    $region33: #{tpu_custom_call.1} parent=1 // pred_fallthru
      _
    // Predicated region
    $region34: #{tpu_custom_call.1} parent=1 // pred_check
      _
    $region35: #{tpu_custom_call.1} parent=1 // pred_check_branch
      %126 = sbr.rel (0) target = $region37
    $region36: #{tpu_custom_call.1} parent=1 // pred_region
      %128 = dma.done [#allocation6], 128
    $region37: #{tpu_custom_call.1} parent=1 // pred_fallthru
      _
    %129 = vsyncpa [#allocation5], 1
    %130 = vsyncpa [#allocation8], 1
    %131 = vsyncpa [#allocation6], 1

</llo_original>
